<compile_context>
chip_gen: v6e
topology: v6e:2x2x1
jax: 0.10.0
libtpu: 0.0.40
codegen_flags: <defaults>
</compile_context>

<pallas_src>
import functools

import jax
import jax.numpy as jnp
from jax import lax
from jax.experimental import pallas as pl
from jax.experimental.pallas import tpu as pltpu


def _mac_kernel(x_ref, w1_ref, p_ref, w2_ref, b2_ref, o_ref, h_ref):
    # Grid: (row tiles [parallel], vocab tiles [arbitrary]).  The hidden cache
    # below relies on the vocab axis (j) being the innermost, sequentially
    # iterated axis: do NOT mark it "parallel" or reorder the grid.
    j = pl.program_id(1)

    @pl.when(j == 0)
    def _():
        # bf16 (or f32) operands, f32 accumulation on the MXU.
        h = jnp.dot(x_ref[...], w1_ref[...], preferred_element_type=jnp.float32)
        h = h + p_ref[0:1, :]                                   # b1 (f32)

        # exact (erf-based) GELU, matching torch.nn.functional.gelu default.
        h = 0.5 * h * (1.0 + lax.erf(h * 0.7071067811865476))

        # LayerNorm over the hidden dim (eps = 1e-5, PyTorch default).
        # Two-pass mean / variance in f32 for numerical stability.
        mean = jnp.mean(h, axis=-1, keepdims=True)
        c = h - mean
        var = jnp.mean(c * c, axis=-1, keepdims=True)
        h = c * lax.rsqrt(var + 1e-5)
        h = h * p_ref[1:2, :] + p_ref[2:3, :]                   # gamma, beta (f32)

        # Cached in the compute dtype (bf16 by default): conscious trade of a
        # tiny LN-output rounding for MXU-friendly operands on the projection.
        h_ref[...] = h.astype(h_ref.dtype)

    # Output projection for this (row tile, vocab tile): logits = h @ W2 + b2.
    o_ref[...] = (
        jnp.dot(h_ref[...], w2_ref[...], preferred_element_type=jnp.float32)
        + b2_ref[...]
    ).astype(o_ref.dtype)


def _round_up(x, m):
    return (x + m - 1) // m * m


def _vmem_capacity_bytes():
    try:
        return int(pltpu.get_tpu_info().vmem_capacity_bytes)
    except Exception:
        return 64 * 1024 * 1024           # conservative fallback (v7x physical VMEM)


def _vmem_bytes(tile_m, tile_n, hidden, c_size, o_size):
    resident = hidden * hidden * c_size + 3 * hidden * 4        # W1 (single-buffered) + params
    stream = 2 * (tile_m * hidden * c_size                      # x tile   (double-buffered)
                  + hidden * tile_n * c_size                    # W2 tile  (double-buffered)
                  + tile_n * 4                                  # b2 tile
                  + tile_m * tile_n * o_size)                   # out tile
    scratch = tile_m * hidden * c_size                          # cached hidden block
    return resident + stream + scratch


@functools.partial(jax.jit, static_argnames=("tile_m", "tile_n", "compute_dtype"))
def mac_layers_forward(x, w1, b1, gamma, beta, w2, b2, *,
                       tile_m=512, tile_n=512, compute_dtype=jnp.bfloat16):
    """x: (batch, seq, hidden) -> (batch, seq, vocab)."""
    batch, seq, hidden = x.shape
    vocab = w2.shape[1]
    M = batch * seq
    out_dtype = x.dtype

    c_size = jnp.dtype(compute_dtype).itemsize
    o_size = jnp.dtype(out_dtype).itemsize

    # Clamp tiles to the problem size while staying (8, 128) aligned; Pallas
    # masks the partial edge blocks, so no divisibility requirements and no
    # wrapper-side padding copies of x / W2.
    tile_m = min(tile_m, _round_up(M, 8))
    tile_n = min(tile_n, _round_up(vocab, 128))

    # Megacore (v7x): make sure the "parallel" row axis has >= 2 programs so
    # the second TensorCore is not left idle for small batch*seq.
    if pl.cdiv(M, tile_m) < 2 and M > 8:
        tile_m = _round_up(pl.cdiv(M, 2), 8)

    # Fit the working set under the physical VMEM capacity (64 MiB on v7x,
    # 128 MiB on v5e/v6e), leaving headroom for Mosaic's internal scratch.
    vmem_cap = int(0.85 * _vmem_capacity_bytes())
    while _vmem_bytes(tile_m, tile_n, hidden, c_size, o_size) > vmem_cap and tile_m > 128:
        tile_m = _round_up(tile_m // 2, 8)
    while _vmem_bytes(tile_m, tile_n, hidden, c_size, o_size) > vmem_cap and tile_n > 128:
        tile_n = _round_up(tile_n // 2, 128)
    # TODO(synk): for very large hidden (e.g. H >= 4096 on v7x) the resident
    # (H, H) W1 block no longer fits even in bf16; tile the first matmul's K
    # dimension instead of keeping W1 fully resident.

    need = _vmem_bytes(tile_m, tile_n, hidden, c_size, o_size)
    vmem_limit = int(min(vmem_cap, max(32 * 1024 * 1024, int(1.25 * need))))

    x2d = x.reshape(M, hidden).astype(compute_dtype)
    w1c = w1.astype(compute_dtype)
    w2c = w2.astype(compute_dtype)
    # Pack the three (hidden,) vectors into one (3, hidden) f32 block: one DMA
    # instead of three tiny ones; all elementwise math stays f32.
    params = jnp.stack([b1, gamma, beta], axis=0).astype(jnp.float32)
    b2r = b2.reshape(1, vocab).astype(jnp.float32)

    grid = (pl.cdiv(M, tile_m), pl.cdiv(vocab, tile_n))

    out2d = pl.pallas_call(
        _mac_kernel,
        out_shape=jax.ShapeDtypeStruct((M, vocab), out_dtype),
        grid_spec=pltpu.PrefetchScalarGridSpec(
            num_scalar_prefetch=0,
            grid=grid,
            in_specs=[
                # x row tile: changes with i only.
                pl.BlockSpec((tile_m, hidden), lambda i, j: (i, 0)),
                # W1 and packed (b1, gamma, beta): constant across the grid ->
                # single-buffered so the freed VMEM goes into bigger tiles.
                pl.BlockSpec((hidden, hidden), lambda i, j: (0, 0),
                             pipeline_mode=pl.Buffered(1)),
                pl.BlockSpec((3, hidden), lambda i, j: (0, 0),
                             pipeline_mode=pl.Buffered(1)),
                # W2 / output-bias vocab tiles: change with j.  Kept at the
                # default depth-2 buffering: the W2 stream is bandwidth-bound,
                # deeper buffering only burns VMEM.
                pl.BlockSpec((hidden, tile_n), lambda i, j: (0, j)),
                pl.BlockSpec((1, tile_n), lambda i, j: (0, j)),
            ],
            out_specs=pl.BlockSpec((tile_m, tile_n), lambda i, j: (i, j)),
            scratch_shapes=[pltpu.VMEM((tile_m, hidden), compute_dtype)],
        ),
        compiler_params=pltpu.CompilerParams(
            # j (vocab) must remain the innermost sequential axis for the
            # hidden-cache reuse in the kernel.
            dimension_semantics=("parallel", "arbitrary"),
            vmem_limit_bytes=vmem_limit,
        ),
    )(x2d, w1c, params, w2c, b2r)

    return out2d.reshape(batch, seq, vocab)


def _reference(x, w1, b1, gamma, beta, w2, b2):
    h = jnp.einsum("bsh,hk->bsk", x, w1) + b1
    h = 0.5 * h * (1.0 + lax.erf(h / jnp.sqrt(2.0)))
    mean = jnp.mean(h, axis=-1, keepdims=True)
    var = jnp.mean((h - mean) ** 2, axis=-1, keepdims=True)
    h = (h - mean) * lax.rsqrt(var + 1e-5) * gamma + beta
    return jnp.einsum("bsk,kv->bsv", h, w2) + b2


if __name__ == "__main__":

    def make_params(key, batch, seq, hidden, vocab, dtype):
        kx, kw1, kb1, kg, kbe, kw2, kb2 = jax.random.split(key, 7)
        x = jax.random.normal(kx, (batch, seq, hidden), dtype=jnp.float32)
        # PyTorch module: dense = Linear(H, H) -> W1 (H,H), b1 (H,)
        #                 layer_norm = LayerNorm(H) -> gamma, beta (H,)
        #                 output = Linear(H, V, bias=False) + bias Parameter(V,)
        w1 = jax.random.normal(kw1, (hidden, hidden), dtype=jnp.float32) * 0.02
        b1 = jax.random.normal(kb1, (hidden,), dtype=jnp.float32) * 0.02
        gamma = 1.0 + 0.1 * jax.random.normal(kg, (hidden,), dtype=jnp.float32)
        beta = 0.1 * jax.random.normal(kbe, (hidden,), dtype=jnp.float32)
        w2 = jax.random.normal(kw2, (hidden, vocab), dtype=jnp.float32) * 0.02
        # module initializes self.bias to zeros; use small random values to
        # exercise the bias-add path.
        b2 = 0.02 * jax.random.normal(kb2, (vocab,), dtype=jnp.float32)
        return tuple(a.astype(dtype) for a in (x, w1, b1, gamma, beta, w2, b2))

    key = jax.random.PRNGKey(0)
    k1, k2 = jax.random.split(key)

    # Case 1: small f32 path (compute_dtype=f32) -> tight check vs reference.
    args = make_params(k1, batch=2, seq=8, hidden=32, vocab=64, dtype=jnp.float32)
    out = jax.block_until_ready(
        mac_layers_forward(*args, compute_dtype=jnp.float32))
    ref = _reference(*args)
    assert out.shape == (2, 8, 64)
    assert jnp.allclose(out, ref, atol=2e-4, rtol=2e-4), "f32 case mismatch"

    # Case 2: default bf16 compute path with partial row / vocab edge tiles and
    # multiple tiles on both grid axes (exercises the cached-hidden reuse and
    # the no-padding edge handling).
    args = make_params(k2, batch=3, seq=50, hidden=64, vocab=320, dtype=jnp.bfloat16)
    out = jax.block_until_ready(
        mac_layers_forward(*args, tile_m=64, tile_n=128))
    ref = _reference(*(a.astype(jnp.float32) for a in args))
    assert out.shape == (3, 50, 320)
    assert jnp.allclose(out.astype(jnp.float32), ref, atol=3e-2, rtol=3e-2), \
        "bf16 case mismatch"

    print("KERNEL_OK")
</pallas_src>

<mosaic_0001>
module attributes {stable_mosaic.version = 11 : i64} {
  func.func @_mac_kernel(%arg0: i32, %arg1: i32, %arg2: memref<8x32xf32, #tpu.memory_space<vmem>>, %arg3: memref<32x32xf32, #tpu.memory_space<vmem>>, %arg4: memref<3x32xf32, #tpu.memory_space<vmem>>, %arg5: memref<32x128xf32, #tpu.memory_space<vmem>>, %arg6: memref<1x128xf32, #tpu.memory_space<vmem>>, %arg7: memref<8x128xf32, #tpu.memory_space<vmem>>, %arg8: memref<8x32xf32, #tpu.memory_space<vmem>>) attributes {dimension_semantics = [#tpu.dimension_semantics<parallel>, #tpu.dimension_semantics<arbitrary>], iteration_bounds = array<i64: 2, 1>, scalar_prefetch = 0 : i64, scratch_operands = 1 : i64, tpu.core_type = #tpu.core_type<tc>, window_params = [{transform_indices = @transform_0, window_bounds = array<i64: 8, 32>}, {pipeline_mode = #tpu.pipeline_mode<synchronous>, transform_indices = @transform_1, window_bounds = array<i64: 32, 32>}, {pipeline_mode = #tpu.pipeline_mode<synchronous>, transform_indices = @transform_2, window_bounds = array<i64: 3, 32>}, {transform_indices = @transform_3, window_bounds = array<i64: 32, 128>}, {transform_indices = @transform_4, window_bounds = array<i64: 1, 128>}, {transform_indices = @transform_5, window_bounds = array<i64: 8, 128>}]} {
    %c0_i32 = arith.constant 0 : i32
    %0 = arith.cmpi eq, %arg1, %c0_i32 : i32
    %1 = arith.extui %0 : i1 to i32
    %c0_i32_0 = arith.constant 0 : i32
    %2 = arith.cmpi ne, %1, %c0_i32_0 : i32
    scf.if %2 {
      %c0_8 = arith.constant 0 : index
      %c0_9 = arith.constant 0 : index
      %10 = vector.load %arg2[%c0_8, %c0_9] : memref<8x32xf32, #tpu.memory_space<vmem>>, vector<8x32xf32>
      %c0_10 = arith.constant 0 : index
      %c0_11 = arith.constant 0 : index
      %11 = vector.load %arg3[%c0_10, %c0_11] : memref<32x32xf32, #tpu.memory_space<vmem>>, vector<32x32xf32>
      %cst_12 = arith.constant dense<0.000000e+00> : vector<8x32xf32>
      %12 = tpu.matmul %10, %11, %cst_12 {dimension_numbers = #tpu.dot_dimension_numbers<[1], [0], [0], [1], [0, 0, 1, 1], [], []>} : vector<8x32xf32>, vector<32x32xf32>, vector<8x32xf32> -> vector<8x32xf32>
      %c0_13 = arith.constant 0 : index
      %c0_14 = arith.constant 0 : index
      %13 = vector.load %arg4[%c0_13, %c0_14] : memref<3x32xf32, #tpu.memory_space<vmem>>, vector<1x32xf32>
      %14 = vector.broadcast %13 : vector<1x32xf32> to vector<8x32xf32>
      %15 = arith.addf %12, %14 : vector<8x32xf32>
      %cst_15 = arith.constant 5.000000e-01 : f32
      %16 = vector.broadcast %cst_15 : f32 to vector<8x32xf32>
      %17 = arith.mulf %16, %15 : vector<8x32xf32>
      %cst_16 = arith.constant 0.707106769 : f32
      %18 = vector.broadcast %cst_16 : f32 to vector<8x32xf32>
      %19 = arith.mulf %15, %18 : vector<8x32xf32>
      %20 = math.erf %19 : vector<8x32xf32>
      %cst_17 = arith.constant 1.000000e+00 : f32
      %21 = vector.broadcast %cst_17 : f32 to vector<8x32xf32>
      %22 = arith.addf %21, %20 : vector<8x32xf32>
      %23 = arith.mulf %17, %22 : vector<8x32xf32>
      %cst_18 = arith.constant dense<0.000000e+00> : vector<8xf32>
      %24 = vector.multi_reduction <add>, %23, %cst_18 [1] : vector<8x32xf32> to vector<8xf32>
      %25 = vector.shape_cast %24 : vector<8xf32> to vector<8x1xf32>
      %cst_19 = arith.constant 3.200000e+01 : f32
      %26 = vector.broadcast %cst_19 : f32 to vector<8x1xf32>
      %27 = arith.divf %25, %26 : vector<8x1xf32>
      %28 = vector.broadcast %27 : vector<8x1xf32> to vector<8x32xf32>
      %29 = arith.subf %23, %28 : vector<8x32xf32>
      %30 = arith.mulf %29, %29 : vector<8x32xf32>
      %cst_20 = arith.constant dense<0.000000e+00> : vector<8xf32>
      %31 = vector.multi_reduction <add>, %30, %cst_20 [1] : vector<8x32xf32> to vector<8xf32>
      %32 = vector.shape_cast %31 : vector<8xf32> to vector<8x1xf32>
      %cst_21 = arith.constant 3.200000e+01 : f32
      %33 = vector.broadcast %cst_21 : f32 to vector<8x1xf32>
      %34 = arith.divf %32, %33 : vector<8x1xf32>
      %cst_22 = arith.constant 9.99999974E-6 : f32
      %35 = vector.broadcast %cst_22 : f32 to vector<8x1xf32>
      %36 = arith.addf %34, %35 : vector<8x1xf32>
      %37 = math.rsqrt %36 : vector<8x1xf32>
      %38 = vector.broadcast %37 : vector<8x1xf32> to vector<8x32xf32>
      %39 = arith.mulf %29, %38 : vector<8x32xf32>
      %c1 = arith.constant 1 : index
      %c0_23 = arith.constant 0 : index
      %40 = vector.load %arg4[%c1, %c0_23] : memref<3x32xf32, #tpu.memory_space<vmem>>, vector<1x32xf32>
      %41 = vector.broadcast %40 : vector<1x32xf32> to vector<8x32xf32>
      %42 = arith.mulf %39, %41 : vector<8x32xf32>
      %c2 = arith.constant 2 : index
      %c0_24 = arith.constant 0 : index
      %43 = vector.load %arg4[%c2, %c0_24] : memref<3x32xf32, #tpu.memory_space<vmem>>, vector<1x32xf32>
      %44 = vector.broadcast %43 : vector<1x32xf32> to vector<8x32xf32>
      %45 = arith.addf %42, %44 : vector<8x32xf32>
      %c0_25 = arith.constant 0 : index
      %c0_26 = arith.constant 0 : index
      %46 = vector.load %arg8[%c0_25, %c0_26] : memref<8x32xf32, #tpu.memory_space<vmem>>, vector<8x32xf32>
      tpu.vector_store %arg8[%c0_25, %c0_26], %45 {strides = array<i32>} : memref<8x32xf32, #tpu.memory_space<vmem>>, vector<8x32xf32>,
    } else {
    }
    %c0 = arith.constant 0 : index
    %c0_1 = arith.constant 0 : index
    %3 = vector.load %arg8[%c0, %c0_1] : memref<8x32xf32, #tpu.memory_space<vmem>>, vector<8x32xf32>
    %c0_2 = arith.constant 0 : index
    %c0_3 = arith.constant 0 : index
    %4 = vector.load %arg5[%c0_2, %c0_3] : memref<32x128xf32, #tpu.memory_space<vmem>>, vector<32x128xf32>
    %cst = arith.constant dense<0.000000e+00> : vector<8x128xf32>
    %5 = tpu.matmul %3, %4, %cst {dimension_numbers = #tpu.dot_dimension_numbers<[1], [0], [0], [1], [0, 0, 1, 1], [], []>} : vector<8x32xf32>, vector<32x128xf32>, vector<8x128xf32> -> vector<8x128xf32>
    %c0_4 = arith.constant 0 : index
    %c0_5 = arith.constant 0 : index
    %6 = vector.load %arg6[%c0_4, %c0_5] : memref<1x128xf32, #tpu.memory_space<vmem>>, vector<1x128xf32>
    %7 = vector.broadcast %6 : vector<1x128xf32> to vector<8x128xf32>
    %8 = arith.addf %5, %7 : vector<8x128xf32>
    %c0_6 = arith.constant 0 : index
    %c0_7 = arith.constant 0 : index
    %9 = vector.load %arg7[%c0_6, %c0_7] : memref<8x128xf32, #tpu.memory_space<vmem>>, vector<8x128xf32>
    tpu.vector_store %arg7[%c0_6, %c0_7], %8 {strides = array<i32>} : memref<8x128xf32, #tpu.memory_space<vmem>>, vector<8x128xf32>,
    return
  }
  func.func @transform_0(%arg0: i32, %arg1: i32) -> (i32, i32) {
    %c0_i32 = arith.constant 0 : i32
    %c0_i32_0 = arith.constant 0 : i32
    return %arg0, %c0_i32 : i32, i32
  }
  func.func @transform_1(%arg0: i32, %arg1: i32) -> (i32, i32) {
    %c0_i32 = arith.constant 0 : i32
    %c0_i32_0 = arith.constant 0 : i32
    %c0_i32_1 = arith.constant 0 : i32
    return %c0_i32, %c0_i32_0 : i32, i32
  }
  func.func @transform_2(%arg0: i32, %arg1: i32) -> (i32, i32) {
    %c0_i32 = arith.constant 0 : i32
    %c0_i32_0 = arith.constant 0 : i32
    %c0_i32_1 = arith.constant 0 : i32
    return %c0_i32, %c0_i32_0 : i32, i32
  }
  func.func @transform_3(%arg0: i32, %arg1: i32) -> (i32, i32) {
    %c0_i32 = arith.constant 0 : i32
    %c0_i32_0 = arith.constant 0 : i32
    return %c0_i32, %arg1 : i32, i32
  }
  func.func @transform_4(%arg0: i32, %arg1: i32) -> (i32, i32) {
    %c0_i32 = arith.constant 0 : i32
    %c0_i32_0 = arith.constant 0 : i32
    return %c0_i32, %arg1 : i32, i32
  }
  func.func @transform_5(%arg0: i32, %arg1: i32) -> (i32, i32) {
    %c0_i32 = arith.constant 0 : i32
    return %arg0, %arg1 : i32, i32
  }
}

</mosaic_0001>

<llo_original>
// kernel: mac_layers_forward.1
$region0: #{mac_layers_forward.1}
  #allocation0 [shape = 'u32[]', space=smem, size = 0x4, offset = 0x4, fixed_abs, tag = 'smem constant byte address 0x4 - core index']
  #allocation1 [shape = 'u32[144,128]{1,0:T(1,128)}', space=vmem, size = 0x12000, scoped, tag = 'internal scratch']
  #allocation2 [shape = 'f32[8,32]{1,0:T(8,128)}', space=vmem, size = 0x1000, scoped, tag = 'scratch operand']
  %s0 = inlined_call_operand.vmem [shape: f32[16,32], index: 0, kind: input, shape index: {}]
  %s1 = inlined_call_operand.hbm [shape: f32[32,32], index: 1, kind: input, shape index: {}]
  %s2 = inlined_call_operand.vmem [shape: f32[3,32], index: 2, kind: input, shape index: {}]
  %s3 = inlined_call_operand.hbm [shape: f32[32,64], index: 3, kind: input, shape index: {}]
  %s4 = inlined_call_operand.vmem [shape: f32[1,64], index: 4, kind: input, shape index: {}]
  %s5 = inlined_call_operand.hbm [shape: f32[16,64], index: 5, kind: output, shape index: {}]
  %s6 = sld [smem:[#allocation0]]
  $region65: #{mac_layers_forward.1} parent=0
    _
  %s8 = ssub.s32 1, %s6
  %s9 = scalar_select 0, %s8, %s6
  $region1: #{mac_layers_forward.1} parent=0
    #allocation3 [shape = 'u8[16384]{0}', space=vmem, size = 0x4000, scoped, tag = 'input window, operand 1, single buffered']
    #allocation4 [shape = 's32[2]{0}', space=sflag, size = 0x8, scoped, tag = 'scoped memory for mac_layers_forward.1']
    #allocation5 [shape = 's32[2]{0}', space=sflag, size = 0x8, scoped, tag = 'scoped memory for mac_layers_forward.1']
    #allocation6 [shape = 'u8[16384]{0}', space=vmem, size = 0x4000, scoped, tag = 'input window, operand 3, single buffered']
    #allocation7 [shape = 's32[1]{0}', space=sflag, size = 0x4, scoped, tag = 'scoped memory for mac_layers_forward.1']
    #allocation8 [shape = 'u8[8192]{0}', space=vmem, size = 0x2000, scoped, tag = 'output window, operand 0']
    %10 = vsyncpa [#allocation4], 0
    %11 = vsyncpa [#allocation7], 0
    %12 = vsyncpa [#allocation5], 0
    %s13 = scalar_lea.sflag [#allocation5], 1
    %14 = vsyncpa %s13, 0
    loop: start=0, step=1, limit=4
    $region2: #{mac_layers_forward.1} parent=1 // loop_pre_header
      _
    $region3: #{mac_layers_forward.1} parent=1 // loop_header
      %s16 = sphi 0, %s20
      %p17 = scmp.ge.s32.totalorder %s16, 4
      %s23 = sphi 0, %s35
      %s24 = sphi 0, %s31
      %s25 = sphi 0, %s23
      %s26 = sphi 0, %s24
      %s27 = sphi 0, %s25
      %s28 = sphi 0, %s26
      %s38 = sphi 0, %s40
      %s41 = sphi 0, %s38
      %s42 = sphi 0, %s41
      %s58 = sphi 0, %s42
      %s62 = sphi 0, %s62
      %s64 = sphi 0, %s62
      %s65 = sphi 0, %s64
      %s79 = sphi 0, %s65
      %s83 = sphi 0, %s83
      %s85 = sphi 0, %s83
      %s86 = sphi 0, %s85
      %s100 = sphi 0, %s86
      %s106 = sphi 0, %s108
      %s109 = sphi 0, %s106
      %s110 = sphi 0, %s109
      %s126 = sphi 0, %s110
      %s132 = sphi 0, %s134
      %s135 = sphi 0, %s132
      %s136 = sphi 0, %s135
      %s152 = sphi 0, %s136
      %s160 = sphi 0, %s162
      %s163 = sphi 0, %s160
      %s164 = sphi 0, %s163
      %s180 = sphi 0, %s164
    $region4: #{mac_layers_forward.1} parent=1 // loop_header_branch
      %19 = sbr.rel (%p17) target = $region8
    $region5: #{mac_layers_forward.1} parent=1 // loop_body
      %s21 = ssub.s32 %s16, 1
      %s22 = ssub.s32 %s16, 2
      %s29 = sadd.s32 1, %s24
      %p30 = scmp.ge.s32.totalorder %s29, 1
      %s31 = scalar_select %p30, 0, %s29
      %s32 = sadd.s32 1, %s23
      %s33 = scalar_select %p30, %s32, %s23
      %p34 = scmp.ge.s32.totalorder %s33, 2
      %s35 = scalar_select %p34, 0, %s33
      %s36 = ssub.s32 %s23, %s35
      %p37 = scmp.eq.s32.totalorder %s36, 0
      %s39 = sadd.s32 %s38, 1
      %s40 = scalar_select %p37, %s38, %s39
      %p43 = pneg %p37
      %p44 = scmp.eq.s32.totalorder %s16, 1
      %p45 = por %p43, %p44
      %p46 = scmp.ne.s32.totalorder %s38, %s41
      %p47 = scmp.eq.s32.totalorder %s16, 0
      %p48 = por %p46, %p47
      %p49 = scmp.ne.s32.totalorder %s38, %s41
      %p50 = scmp.eq.s32.totalorder %s21, 1
      %p51 = por %p49, %p50
      %p52 = scmp.ne.s32.totalorder %s41, %s42
      %p53 = scmp.eq.s32.totalorder %s21, 0
      %p54 = por %p52, %p53
      %p55 = scmp.ne.s32.totalorder %s41, %s42
      %p56 = scmp.eq.s32.totalorder %s22, 1
      %p57 = por %p55, %p56
      %p59 = scmp.ne.s32.totalorder %s42, %s58
      %p60 = scmp.eq.s32.totalorder %s22, 0
      %p61 = por %p59, %p60
      %s63 = sadd.s32 %s62, 1
      %p66 = scmp.eq.s32.totalorder %s16, 1
      %p67 = scmp.ne.s32.totalorder %s62, %s64
      %p68 = scmp.eq.s32.totalorder %s16, 0
      %p69 = por %p67, %p68
      %p70 = scmp.ne.s32.totalorder %s62, %s64
      %p71 = scmp.eq.s32.totalorder %s21, 1
      %p72 = por %p70, %p71
      %p73 = scmp.ne.s32.totalorder %s64, %s65
      %p74 = scmp.eq.s32.totalorder %s21, 0
      %p75 = por %p73, %p74
      %p76 = scmp.ne.s32.totalorder %s64, %s65
      %p77 = scmp.eq.s32.totalorder %s22, 1
      %p78 = por %p76, %p77
      %p80 = scmp.ne.s32.totalorder %s65, %s79
      %p81 = scmp.eq.s32.totalorder %s22, 0
      %p82 = por %p80, %p81
      %s84 = sadd.s32 %s83, 1
      %p87 = scmp.eq.s32.totalorder %s16, 1
      %p88 = scmp.ne.s32.totalorder %s83, %s85
      %p89 = scmp.eq.s32.totalorder %s16, 0
      %p90 = por %p88, %p89
      %p91 = scmp.ne.s32.totalorder %s83, %s85
      %p92 = scmp.eq.s32.totalorder %s21, 1
      %p93 = por %p91, %p92
      %p94 = scmp.ne.s32.totalorder %s85, %s86
      %p95 = scmp.eq.s32.totalorder %s21, 0
      %p96 = por %p94, %p95
      %p97 = scmp.ne.s32.totalorder %s85, %s86
      %p98 = scmp.eq.s32.totalorder %s22, 1
      %p99 = por %p97, %p98
      %p101 = scmp.ne.s32.totalorder %s86, %s100
      %p102 = scmp.eq.s32.totalorder %s22, 0
      %p103 = por %p101, %p102
      %s104 = ssub.s32 %s24, %s31
      %p105 = scmp.eq.s32.totalorder %s104, 0
      %s107 = sadd.s32 %s106, 1
      %s108 = scalar_select %p105, %s106, %s107
      %p111 = pneg %p105
      %p112 = scmp.eq.s32.totalorder %s16, 1
      %p113 = por %p111, %p112
      %p114 = scmp.ne.s32.totalorder %s106, %s109
      %p115 = scmp.eq.s32.totalorder %s16, 0
      %p116 = por %p114, %p115
      %p117 = scmp.ne.s32.totalorder %s106, %s109
      %p118 = scmp.eq.s32.totalorder %s21, 1
      %p119 = por %p117, %p118
      %p120 = scmp.ne.s32.totalorder %s109, %s110
      %p121 = scmp.eq.s32.totalorder %s21, 0
      %p122 = por %p120, %p121
      %p123 = scmp.ne.s32.totalorder %s109, %s110
      %p124 = scmp.eq.s32.totalorder %s22, 1
      %p125 = por %p123, %p124
      %p127 = scmp.ne.s32.totalorder %s110, %s126
      %p128 = scmp.eq.s32.totalorder %s22, 0
      %p129 = por %p127, %p128
      %s130 = ssub.s32 %s24, %s31
      %p131 = scmp.eq.s32.totalorder %s130, 0
      %s133 = sadd.s32 %s132, 1
      %s134 = scalar_select %p131, %s132, %s133
      %p137 = pneg %p131
      %p138 = scmp.eq.s32.totalorder %s16, 1
      %p139 = por %p137, %p138
      %p140 = scmp.ne.s32.totalorder %s132, %s135
      %p141 = scmp.eq.s32.totalorder %s16, 0
      %p142 = por %p140, %p141
      %p143 = scmp.ne.s32.totalorder %s132, %s135
      %p144 = scmp.eq.s32.totalorder %s21, 1
      %p145 = por %p143, %p144
      %p146 = scmp.ne.s32.totalorder %s135, %s136
      %p147 = scmp.eq.s32.totalorder %s21, 0
      %p148 = por %p146, %p147
      %p149 = scmp.ne.s32.totalorder %s135, %s136
      %p150 = scmp.eq.s32.totalorder %s22, 1
      %p151 = por %p149, %p150
      %p153 = scmp.ne.s32.totalorder %s136, %s152
      %p154 = scmp.eq.s32.totalorder %s22, 0
      %p155 = por %p153, %p154
      %s156 = ssub.s32 %s23, %s35
      %s157 = ssub.s32 %s24, %s31
      %s158 = sor.u32 %s156, %s157
      %p159 = scmp.eq.s32.totalorder %s158, 0
      %s161 = sadd.s32 %s160, 1
      %s162 = scalar_select %p159, %s160, %s161
      %p165 = pneg %p159
      %p166 = scmp.eq.s32.totalorder %s16, 1
      %p167 = por %p165, %p166
      %p168 = scmp.ne.s32.totalorder %s160, %s163
      %p169 = scmp.eq.s32.totalorder %s16, 0
      %p170 = por %p168, %p169
      %p171 = scmp.ne.s32.totalorder %s160, %s163
      %p172 = scmp.eq.s32.totalorder %s21, 1
      %p173 = por %p171, %p172
      %p174 = scmp.ne.s32.totalorder %s163, %s164
      %p175 = scmp.eq.s32.totalorder %s21, 0
      %p176 = por %p174, %p175
      %p177 = scmp.ne.s32.totalorder %s163, %s164
      %p178 = scmp.eq.s32.totalorder %s22, 1
      %p179 = por %p177, %p178
      %p181 = scmp.ne.s32.totalorder %s164, %s180
      %p182 = scmp.eq.s32.totalorder %s22, 0
      %p183 = por %p181, %p182
      %p184 = scmp.le.s32.totalorder 1, %s16
      %p185 = scmp.lt.s32.totalorder %s16, 3
      %p186 = pnand %p184, %p185
      %p187 = pneg %p186
      // Predicated region
      $region9: #{mac_layers_forward.1} parent=5 // pred_check
        _
      $region10: #{mac_layers_forward.1} parent=5 // pred_check_branch
        %189 = sbr.rel (%p186) target = $region12
      $region11: #{mac_layers_forward.1} parent=5 // pred_region
        %s190 = ssub.s32 %s16, 1
        // Predicated region
        $region13: #{mac_layers_forward.1} parent=11 // pred_check
          %p191 = pneg %p75
        $region14: #{mac_layers_forward.1} parent=11 // pred_check_branch
          %193 = sbr.rel (%p191) target = $region16
        $region15: #{mac_layers_forward.1} parent=11 // pred_region
          %s195 = ssub.s32 512, 512
          %196 = vsyncadd [#allocation4], %s195
          %s197 = sshll.u32 [#allocation3], 4
          %s198 = int_to_ptr.vmem [resolvable:$true] %s197
          %203 = dma.hbm_to_vmem [thread:$0]  %s1, 512, %s198, [#allocation4], 128, 128, 8
        $region16: #{mac_layers_forward.1} parent=11 // pred_fallthru
          _
        // Predicated region
        $region17: #{mac_layers_forward.1} parent=11 // pred_check
          %p204 = pneg %p96
        $region18: #{mac_layers_forward.1} parent=11 // pred_check_branch
          %206 = sbr.rel (%p204) target = $region20
        $region19: #{mac_layers_forward.1} parent=11 // pred_region
          _
        $region20: #{mac_layers_forward.1} parent=11 // pred_fallthru
          _
        // Predicated region
        $region21: #{mac_layers_forward.1} parent=11 // pred_check
          %p207 = pneg %p122
        $region22: #{mac_layers_forward.1} parent=11 // pred_check_branch
          %209 = sbr.rel (%p207) target = $region24
        $region23: #{mac_layers_forward.1} parent=11 // pred_region
          %s211 = ssub.s32 512, 512
          %212 = vsyncadd [#allocation7], %s211
          %s213 = smul.addr %s26, 128
          %s214 = scalar_lea.hbm %s3, %s213
          %s215 = sshll.u32 [#allocation6], 4
          %s216 = int_to_ptr.vmem [resolvable:$true] %s215
          %221 = dma.hbm_to_vmem [thread:$0]  %s214, 512, %s216, [#allocation7], 128, 128, 8
        $region24: #{mac_layers_forward.1} parent=11 // pred_fallthru
          _
        // Predicated region
        $region25: #{mac_layers_forward.1} parent=11 // pred_check
          %p222 = pneg %p148
        $region26: #{mac_layers_forward.1} parent=11 // pred_check_branch
          %224 = sbr.rel (%p222) target = $region28
        $region27: #{mac_layers_forward.1} parent=11 // pred_region
          %p225 = scmp.lt.s32.totalorder %s26, 0
          %s226 = scalar_select %p225, %s26, 0
          %s227 = scalar_lea.vmem %s4, %s226
        $region28: #{mac_layers_forward.1} parent=11 // pred_fallthru
          _
      $region12: #{mac_layers_forward.1} parent=5 // pred_fallthru
        _
      %p228 = scmp.lt.s32.totalorder %s16, 2
      // Predicated region
      $region29: #{mac_layers_forward.1} parent=5 // pred_check
        %p229 = pneg %p228
      $region30: #{mac_layers_forward.1} parent=5 // pred_check_branch
        %231 = sbr.rel (%p229) target = $region32
      $region31: #{mac_layers_forward.1} parent=5 // pred_region
        // Predicated region
        $region33: #{mac_layers_forward.1} parent=31 // pred_check
          %p232 = pneg %p48
        $region34: #{mac_layers_forward.1} parent=31 // pred_check_branch
          %234 = sbr.rel (%p232) target = $region36
        $region35: #{mac_layers_forward.1} parent=31 // pred_region
          %p235 = scmp.lt.s32.totalorder %s23, 1
          %s236 = scalar_select %p235, %s23, 1
          %s237 = smul.addr %s236, 8
          %s238 = scalar_lea.vmem %s0, %s237
        $region36: #{mac_layers_forward.1} parent=31 // pred_fallthru
          _
      $region32: #{mac_layers_forward.1} parent=5 // pred_fallthru
        _
      %p239 = scmp.le.s32.totalorder 1, %s16
      %p240 = scmp.lt.s32.totalorder %s16, 3
      %p241 = pnand %p239, %p240
      %p242 = pneg %p241
      // Predicated region
      $region37: #{mac_layers_forward.1} parent=5 // pred_check
        _
      $region38: #{mac_layers_forward.1} parent=5 // pred_check_branch
        %244 = sbr.rel (%p241) target = $region40
      $region39: #{mac_layers_forward.1} parent=5 // pred_region
        %s245 = ssub.s32 %s16, 1
        // Predicated region
        $region41: #{mac_layers_forward.1} parent=39 // pred_check
          %p246 = pneg %p75
        $region42: #{mac_layers_forward.1} parent=39 // pred_check_branch
          %248 = sbr.rel (%p246) target = $region44
        $region43: #{mac_layers_forward.1} parent=39 // pred_region
          %249 = dma.done [#allocation4], 512
        $region44: #{mac_layers_forward.1} parent=39 // pred_fallthru
          _
        // Predicated region
        $region45: #{mac_layers_forward.1} parent=39 // pred_check
          %p250 = pneg %p122
        $region46: #{mac_layers_forward.1} parent=39 // pred_check_branch
          %252 = sbr.rel (%p250) target = $region48
        $region47: #{mac_layers_forward.1} parent=39 // pred_region
          %253 = dma.done [#allocation7], 512
        $region48: #{mac_layers_forward.1} parent=39 // pred_fallthru
          _
        %p254 = scmp.lt.s32.totalorder %s25, 1
        %s255 = scalar_select %p254, %s25, 1
        %s256 = smul.addr %s255, 8
        %s257 = scalar_lea.vmem %s0, %s256
        %p258 = pneg %p54
        %p259 = pneg %p51
        %p260 = pneg %p75
        %p261 = pneg %p72
        %p262 = pneg %p96
        %p263 = pneg %p93
        %p264 = pneg %p122
        %p265 = pneg %p119
        %p266 = scmp.lt.s32.totalorder %s26, 0
        %s267 = scalar_select %p266, %s26, 0
        %s268 = scalar_lea.vmem %s4, %s267
        %p269 = pneg %p148
        %p270 = pneg %p145
        %p271 = pneg %p176
        %p272 = pneg %p173
        %s273 = sand.u32 %s163, 1
        %s274 = scalar_lea.sflag [#allocation5], %s273
        %s275 = sand.u32 %s163, 1
        %s276 = smul.addr %s275, 8
        %s277 = scalar_lea.vmem [#allocation8], %s276
        %p278 = scmp.lt.s32.totalorder %s25, 1
        %s279 = scalar_select %p278, %s25, 1
        %s280 = smul.addr %s279, 8
        %s281 = scalar_lea.vmem %s0, %s280
        %p282 = scmp.lt.s32.totalorder %s26, 0
        %s283 = scalar_select %p282, %s26, 0
        %s284 = scalar_lea.vmem %s4, %s283
        %p285 = scmp.eq.s32.totalorder %s26, 0
        // Predicated region
        $region49: #{mac_layers_forward.1} parent=39 // pred_check
          %p286 = pneg %p285
        $region50: #{mac_layers_forward.1} parent=39 // pred_check_branch
          %288 = sbr.rel (%p286) target = $region52
        $region51: #{mac_layers_forward.1} parent=39 // pred_region
          %v289 = vld [vmem:[%s281] sm:$0xff]
          %v290 = vld [vmem:[#allocation3] sm:$0xff]
          %v291 = vld [vmem:[#allocation3 + $0x8] sm:$0xff]
          %v292 = vld [vmem:[#allocation3 + $0x10] sm:$0xff]
          %v293 = vld [vmem:[#allocation3 + $0x18] sm:$0xff]
          %v294 = vld [vmem:[%s2] sm:$0x1]
          %v295 = vlaneseq
          %v296 = vshrl.u32 %v295, 7
          %v297 = vsub.s32 0, %v296
          %v298 = vrot.slane %v294, %v297
          %vm299 = vcmask 261120
          %v301 = vsel %vm299, %v289, 0
          %303 = vmatprep.subr.mxu0 0.0
          %304 = vmatpush1.msra.mxu0 0.0
          %305 = vmatprep.subr.mxu0 0.0
          %306 = vmatpush1.msra.mxu0 0.0
          %307 = vmatprep.subr.mxu0 0.0
          %308 = vmatpush1.msra.mxu0 0.0
          %309 = vmatprep.subr.mxu0 0.0
          %310 = vmatpush1.msra.mxu0 0.0
          %311 = vmatprep.subr.mxu0 0.0
          %312 = vmatpush1.msra.mxu0 0.0
          %313 = vmatprep.subr.mxu0 0.0
          %314 = vmatpush1.msra.mxu0 0.0
          %315 = vmatprep.subr.mxu0 0.0
          %316 = vmatpush1.msra.mxu0 0.0
          %317 = vmatprep.subr.mxu0 0.0
          %318 = vmatpush1.msra.mxu0 0.0
          %319 = vmatprep.subr.mxu0 0.0
          %320 = vmatpush1.msra.mxu0 0.0
          %321 = vmatprep.subr.mxu0 0.0
          %322 = vmatpush1.msra.mxu0 0.0
          %323 = vmatprep.subr.mxu0 0.0
          %324 = vmatpush1.msra.mxu0 0.0
          %325 = vmatprep.subr.mxu0 0.0
          %326 = vmatpush1.msra.mxu0 0.0
          %327 = vmatprep.subr.mxu0 0.0
          %328 = vmatpush1.msra.mxu0 %v293
          %329 = vmatprep.subr.mxu0 0.0
          %330 = vmatpush1.msra.mxu0 %v292
          %331 = vmatprep.subr.mxu0 0.0
          %332 = vmatpush1.msra.mxu0 %v291
          %333 = vmatprep.subr.mxu0 0.0
          %334 = vmatpush1.msra.mxu0 %v290
          %335 = vmatprep.subr.mxu0 0.0
          %336 = vmatpush2.msra.mxu0 0.0
          %337 = vmatprep.subr.mxu0 0.0
          %338 = vmatpush2.msra.mxu0 0.0
          %339 = vmatprep.subr.mxu0 0.0
          %340 = vmatpush2.msra.mxu0 0.0
          %341 = vmatprep.subr.mxu0 0.0
          %342 = vmatpush2.msra.mxu0 0.0
          %343 = vmatprep.subr.mxu0 0.0
          %344 = vmatpush2.msra.mxu0 0.0
          %345 = vmatprep.subr.mxu0 0.0
          %346 = vmatpush2.msra.mxu0 0.0
          %347 = vmatprep.subr.mxu0 0.0
          %348 = vmatpush2.msra.mxu0 0.0
          %349 = vmatprep.subr.mxu0 0.0
          %350 = vmatpush2.msra.mxu0 0.0
          %351 = vmatprep.subr.mxu0 0.0
          %352 = vmatpush2.msra.mxu0 0.0
          %353 = vmatprep.subr.mxu0 0.0
          %354 = vmatpush2.msra.mxu0 0.0
          %355 = vmatprep.subr.mxu0 0.0
          %356 = vmatpush2.msra.mxu0 0.0
          %357 = vmatprep.subr.mxu0 0.0
          %358 = vmatpush2.msra.mxu0 0.0
          %359 = vmatprep.subr.mxu0 0.0
          %360 = vmatpush2.msra.mxu0 0.0
          %361 = vmatprep.subr.mxu0 0.0
          %362 = vmatpush2.msra.mxu0 0.0
          %363 = vmatprep.subr.mxu0 0.0
          %364 = vmatpush2.msra.mxu0 0.0
          %365 = vmatprep.subr.mxu0 0.0
          %366 = vmatpush2.msra.mxu0 0.0
          %367 = vmatprep.mubr.f32.mxu0 0.0
          %368 = vmatmul.mubr.f32.gmra.mxu0 %v301
          %v369 = vpop.f32.mrf.mxu0
          %v370 = vadd.f32 %v298, %v369
          %v371 = vpop.f32.mrf.mxu0
          %372 = vdwg.mxu0
          %v373 = vmul.f32 %v370, 0.5
          %v374 = vmul.f32 %v370, 0.70710677
          %v375 = verf.f32.pop %v374
          %v376 = vadd.f32 %v375, 1.0
          %v377 = vmul.f32 %v373, %v376
          %v378 = vsel %vm299, %v377, 0.0
          %379 = vadd.xlane.f32.xlu0 %v378
          %v380 = vpop.xlane.xlu0 %379
          %v381 = vrcp.pop 32.0
          %v382 = vmul.f32 %v380, %v381
          %v383 = vsub.f32 %v377, %v382
          %v384 = vmul.f32 %v383, %v383
          %v385 = vsel %vm299, %v384, 0.0
          %386 = vadd.xlane.f32.xlu0 %v385
          %v387 = vpop.xlane.xlu0 %386
          %v388 = vmul.f32 %v387, %v381
          %v389 = vadd.f32 %v388, 1e-05
          %v390 = vrsqrt.pop %v389
          %v391 = vmul.f32 %v383, %v390
          %v392 = vld [vmem:[%s2 + $0x1] sm:$0x1]
          %v393 = vlaneseq
          %v394 = vshrl.u32 %v393, 7
          %v395 = vsub.s32 0, %v394
          %v396 = vrot.slane %v392, %v395
          %v397 = vmul.f32 %v391, %v396
          %v398 = vld [vmem:[%s2 + $0x2] sm:$0x1]
          %v399 = vlaneseq
          %v400 = vshrl.u32 %v399, 7
          %v401 = vsub.s32 0, %v400
          %v402 = vrot.slane %v398, %v401
          %v403 = vadd.f32 %v397, %v402
          %404 = vst.msk [vmem:[#allocation2] sm:$0xff] %vm299, %v403
        $region52: #{mac_layers_forward.1} parent=39 // pred_fallthru
          _
        %v405 = vld [vmem:[#allocation2] sm:$0xff]
        %v406 = vld [vmem:[#allocation6] sm:$0xff]
        %v407 = vld [vmem:[#allocation6 + $0x8] sm:$0xff]
        %v408 = vld [vmem:[#allocation6 + $0x10] sm:$0xff]
        %v409 = vld [vmem:[#allocation6 + $0x18] sm:$0xff]
        %v410 = vld [vmem:[%s284] sm:$0x1]
        %v412 = vlaneseq
        %v413 = vshrl.u32 %v412, 7
        %v414 = vsub.s32 0, %v413
        %v415 = vrot.slane %v410, %v414
        %vm417 = vcmask 261120
        %v419 = vsel %vm417, %v405, 0
        %421 = vmatprep.subr.mxu0 0.0
        %422 = vmatpush1.msra.mxu0 0.0
        %423 = vmatprep.subr.mxu0 0.0
        %424 = vmatpush1.msra.mxu0 0.0
        %425 = vmatprep.subr.mxu0 0.0
        %426 = vmatpush1.msra.mxu0 0.0
        %427 = vmatprep.subr.mxu0 0.0
        %428 = vmatpush1.msra.mxu0 0.0
        %429 = vmatprep.subr.mxu0 0.0
        %430 = vmatpush1.msra.mxu0 0.0
        %431 = vmatprep.subr.mxu0 0.0
        %432 = vmatpush1.msra.mxu0 0.0
        %433 = vmatprep.subr.mxu0 0.0
        %434 = vmatpush1.msra.mxu0 0.0
        %435 = vmatprep.subr.mxu0 0.0
        %436 = vmatpush1.msra.mxu0 0.0
        %437 = vmatprep.subr.mxu0 0.0
        %438 = vmatpush1.msra.mxu0 0.0
        %439 = vmatprep.subr.mxu0 0.0
        %440 = vmatpush1.msra.mxu0 0.0
        %441 = vmatprep.subr.mxu0 0.0
        %442 = vmatpush1.msra.mxu0 0.0
        %443 = vmatprep.subr.mxu0 0.0
        %444 = vmatpush1.msra.mxu0 0.0
        %445 = vmatprep.subr.mxu0 0.0
        %446 = vmatpush1.msra.mxu0 %v409
        %447 = vmatprep.subr.mxu0 0.0
        %448 = vmatpush1.msra.mxu0 %v408
        %449 = vmatprep.subr.mxu0 0.0
        %450 = vmatpush1.msra.mxu0 %v407
        %451 = vmatprep.subr.mxu0 0.0
        %452 = vmatpush1.msra.mxu0 %v406
        %453 = vmatprep.subr.mxu0 0.0
        %454 = vmatpush2.msra.mxu0 0.0
        %455 = vmatprep.subr.mxu0 0.0
        %456 = vmatpush2.msra.mxu0 0.0
        %457 = vmatprep.subr.mxu0 0.0
        %458 = vmatpush2.msra.mxu0 0.0
        %459 = vmatprep.subr.mxu0 0.0
        %460 = vmatpush2.msra.mxu0 0.0
        %461 = vmatprep.subr.mxu0 0.0
        %462 = vmatpush2.msra.mxu0 0.0
        %463 = vmatprep.subr.mxu0 0.0
        %464 = vmatpush2.msra.mxu0 0.0
        %465 = vmatprep.subr.mxu0 0.0
        %466 = vmatpush2.msra.mxu0 0.0
        %467 = vmatprep.subr.mxu0 0.0
        %468 = vmatpush2.msra.mxu0 0.0
        %469 = vmatprep.subr.mxu0 0.0
        %470 = vmatpush2.msra.mxu0 0.0
        %471 = vmatprep.subr.mxu0 0.0
        %472 = vmatpush2.msra.mxu0 0.0
        %473 = vmatprep.subr.mxu0 0.0
        %474 = vmatpush2.msra.mxu0 0.0
        %475 = vmatprep.subr.mxu0 0.0
        %476 = vmatpush2.msra.mxu0 0.0
        %477 = vmatprep.subr.mxu0 0.0
        %478 = vmatpush2.msra.mxu0 0.0
        %479 = vmatprep.subr.mxu0 0.0
        %480 = vmatpush2.msra.mxu0 0.0
        %481 = vmatprep.subr.mxu0 0.0
        %482 = vmatpush2.msra.mxu0 0.0
        %483 = vmatprep.subr.mxu0 0.0
        %484 = vmatpush2.msra.mxu0 0.0
        %485 = vmatprep.mubr.f32.mxu0 0.0
        %486 = vmatmul.mubr.f32.gmra.mxu0 %v419
        %v487 = vpop.f32.mrf.mxu0
        %v488 = vadd.f32 %v415, %v487
        %v489 = vpop.f32.mrf.mxu0
        %490 = vdwg.mxu0
        %491 = vst [vmem:[%s277] sm:$0xff] %v488
        %s492 = sand.u32 %s163, 1
        %s493 = scalar_lea.sflag [#allocation5], %s492
        %s494 = sand.u32 %s163, 1
        %s495 = smul.addr %s494, 8
        %s496 = scalar_lea.vmem [#allocation8], %s495
        // Predicated region
        $region53: #{mac_layers_forward.1} parent=39 // pred_check
          %p497 = pneg %p173
        $region54: #{mac_layers_forward.1} parent=39 // pred_check_branch
          %499 = sbr.rel (%p497) target = $region56
        $region55: #{mac_layers_forward.1} parent=39 // pred_region
          %s501 = ssub.s32 128, 128
          %502 = vsyncadd %s493, %s501
          %s503 = sadd.s32 %s26, %s25
          %s504 = smul.addr %s503, 128
          %s505 = scalar_lea.hbm %s5, %s504
          %s507 = sshll.u32 %s496, 4
          %s508 = int_to_ptr.vmem [resolvable:$true] %s507
          %510 = dma.vmem_to_hbm [thread:$0]  %s508, 128, %s505, %s493
        $region56: #{mac_layers_forward.1} parent=39 // pred_fallthru
          _
      $region40: #{mac_layers_forward.1} parent=5 // pred_fallthru
        _
      %p511 = scmp.le.s32.totalorder 2, %s16
      // Predicated region
      $region57: #{mac_layers_forward.1} parent=5 // pred_check
        %p512 = pneg %p511
      $region58: #{mac_layers_forward.1} parent=5 // pred_check_branch
        %514 = sbr.rel (%p512) target = $region60
      $region59: #{mac_layers_forward.1} parent=5 // pred_region
        %s515 = ssub.s32 %s16, 2
        // Predicated region
        $region61: #{mac_layers_forward.1} parent=59 // pred_check
          %p516 = pneg %p179
        $region62: #{mac_layers_forward.1} parent=59 // pred_check_branch
          %518 = sbr.rel (%p516) target = $region64
        $region63: #{mac_layers_forward.1} parent=59 // pred_region
          %s519 = sand.u32 %s164, 1
          %s520 = scalar_lea.sflag [#allocation5], %s519
          %s521 = sand.u32 %s164, 1
          %s522 = smul.addr %s521, 8
          %s523 = scalar_lea.vmem [#allocation8], %s522
          %524 = dma.done %s520, 128
        $region64: #{mac_layers_forward.1} parent=59 // pred_fallthru
          _
      $region60: #{mac_layers_forward.1} parent=5 // pred_fallthru
        _
    $region6: #{mac_layers_forward.1} parent=1 // loop_footer
      %s20 = sadd.s32 1, %s16
    $region7: #{mac_layers_forward.1} parent=1 // loop_footer_branch
      %15 = sbr.rel target = $region3
    $region8: #{mac_layers_forward.1} parent=1 // loop_exit
      _
    %525 = vsyncpa [#allocation4], 1
    %s526 = scalar_lea.sflag [#allocation4], 1
    %527 = vsyncpa %s526, 1
    %528 = vsyncpa [#allocation7], 1
    %529 = vsyncpa [#allocation5], 1
    %s530 = scalar_lea.sflag [#allocation5], 1
    %531 = vsyncpa %s530, 1

</llo_original>
